<compile_context>
chip_gen: v6e
topology: v6e:2x2x1
jax: 0.10.0
libtpu: 0.0.40
codegen_flags: <defaults>
</compile_context>

<pallas_src>
import jax
import jax.numpy as jnp
from jax.experimental import pallas as pl
from jax.experimental.pallas import tpu as pltpu

# ----------------------------- module hyper-params ---------------------------
N_SRC_VOCAB = 16          # n_src_vocab (Linear out_features)
D_WORD_VEC = 32           # d_word_vec  (Linear in_features)
B = 2                     # batch
L = 8                     # sequence length
V_PAD = 128               # vocab dim padded to one full TPU lane width
WB_ROWS = D_WORD_VEC + 8  # fused weight+bias operand: W rows + one sublane tile


# ----------------------------- Pallas kernel ---------------------------------
def decoder_kernel(x_ref, wb_ref, o_ref):
    """y = x @ W + b.

    x_ref : (B*L, D)          activations, sublane-dense
    wb_ref: (D+8, V_PAD)      rows [0:D) = W (pre-transposed), row D = bias
    o_ref : (B, L, V_PAD)     lane-dense padded logits
    """
    w = wb_ref[:D_WORD_VEC, :]                      # (D, V_PAD)
    b = wb_ref[D_WORD_VEC:D_WORD_VEC + 1, :]        # (1, V_PAD) broadcast add
    y = jnp.dot(x_ref[...], w, preferred_element_type=jnp.float32) + b
    # (B*L, V_PAD) -> (B, L, V_PAD): pure sublane-group split, layout-preserving.
    o_ref[...] = y.reshape(o_ref.shape)


# ----------------------------- wrapper ----------------------------------------
def decoder_forward(enc_output, wb_pad):
    """Apply the Decoder (Linear) to enc_output of shape (B, L, D)."""
    b_, l_, d = enc_output.shape
    x2d = enc_output.reshape(b_ * l_, d)            # contiguous -> free reshape

    cost = pl.CostEstimate(
        flops=2 * (b_ * l_) * d * V_PAD,
        transcendentals=0,
        bytes_accessed=(b_ * l_ * d + WB_ROWS * V_PAD + b_ * l_ * V_PAD) * 4,
    )

    out_pad = pl.pallas_call(
        decoder_kernel,
        out_shape=jax.ShapeDtypeStruct((b_, l_, V_PAD), jnp.float32),
        in_specs=[
            pl.BlockSpec(memory_space=pltpu.MemorySpace.VMEM),   # activations
            pl.BlockSpec(memory_space=pltpu.MemorySpace.VMEM),   # fused W|b
        ],
        out_specs=pl.BlockSpec(memory_space=pltpu.MemorySpace.VMEM),
        cost_estimate=cost,
    )(x2d, wb_pad)

    # Only remaining epilogue: slice the real vocab columns (module semantics).
    return out_pad[..., :N_SRC_VOCAB]


# ----------------------------- parameters -------------------------------------
def init_params(key):
    """nn.Linear(d_word_vec, n_src_vocab)-style params, pre-transposed,
    lane-padded, and bias-fused once (outside the hot path)."""
    kw, kb = jax.random.split(key)
    bound = 1.0 / (D_WORD_VEC ** 0.5)
    # Stored pre-transposed: (in_features, out_features) for x @ W.
    w = jax.random.uniform(kw, (D_WORD_VEC, N_SRC_VOCAB), jnp.float32,
                           minval=-bound, maxval=bound)
    b = jax.random.uniform(kb, (1, N_SRC_VOCAB), jnp.float32,
                           minval=-bound, maxval=bound)
    # One fused operand: rows [0:D) = lane-padded W, row D = lane-padded bias.
    wb_pad = jnp.zeros((WB_ROWS, V_PAD), jnp.float32)
    wb_pad = wb_pad.at[:D_WORD_VEC, :N_SRC_VOCAB].set(w)
    wb_pad = wb_pad.at[D_WORD_VEC, :N_SRC_VOCAB].set(b[0])
    return w, b, wb_pad


# ----------------------------- main --------------------------------------------
if __name__ == "__main__":
    key = jax.random.PRNGKey(0)
    pkey, xkey = jax.random.split(key)

    w, b, wb_pad = init_params(pkey)
    enc_output = jax.random.normal(xkey, (B, L, D_WORD_VEC), dtype=jnp.float32)

    logits = jax.jit(decoder_forward)(enc_output, wb_pad)
    jax.block_until_ready(logits)

    # Reference check against plain XLA: y = x @ W + b.
    ref = enc_output @ w + b[0]
    assert logits.shape == (B, L, N_SRC_VOCAB)
    assert bool(jnp.all(jnp.isfinite(logits)))
    assert bool(jnp.allclose(logits, ref, atol=1e-5, rtol=1e-5))

    print("KERNEL_OK")
</pallas_src>

<mosaic_0001>
module attributes {stable_mosaic.version = 11 : i64} {
  func.func @decoder_kernel(%arg0: memref<16x32xf32, #tpu.memory_space<vmem>>, %arg1: memref<40x128xf32, #tpu.memory_space<vmem>>, %arg2: memref<2x8x128xf32, #tpu.memory_space<vmem>>) attributes {dimension_semantics = [], scalar_prefetch = 0 : i64, scratch_operands = 0 : i64, tpu.core_type = #tpu.core_type<tc>} {
    %c0 = arith.constant 0 : index
    %c0_0 = arith.constant 0 : index
    %0 = vector.load %arg1[%c0, %c0_0] : memref<40x128xf32, #tpu.memory_space<vmem>>, vector<32x128xf32>
    %c32 = arith.constant 32 : index
    %c0_1 = arith.constant 0 : index
    %1 = vector.load %arg1[%c32, %c0_1] : memref<40x128xf32, #tpu.memory_space<vmem>>, vector<1x128xf32>
    %c0_2 = arith.constant 0 : index
    %c0_3 = arith.constant 0 : index
    %2 = vector.load %arg0[%c0_2, %c0_3] : memref<16x32xf32, #tpu.memory_space<vmem>>, vector<16x32xf32>
    %cst = arith.constant dense<0.000000e+00> : vector<16x128xf32>
    %3 = tpu.matmul %2, %0, %cst {dimension_numbers = #tpu.dot_dimension_numbers<[1], [0], [0], [1], [0, 0, 1, 1], [], []>} : vector<16x32xf32>, vector<32x128xf32>, vector<16x128xf32> -> vector<16x128xf32>
    %4 = vector.broadcast %1 : vector<1x128xf32> to vector<16x128xf32>
    %5 = arith.addf %3, %4 : vector<16x128xf32>
    %6 = vector.shape_cast %5 : vector<16x128xf32> to vector<2x8x128xf32>
    %c0_4 = arith.constant 0 : index
    %c0_5 = arith.constant 0 : index
    %c0_6 = arith.constant 0 : index
    %7 = vector.load %arg2[%c0_4, %c0_5, %c0_6] : memref<2x8x128xf32, #tpu.memory_space<vmem>>, vector<2x8x128xf32>
    tpu.vector_store %arg2[%c0_4, %c0_5, %c0_6], %6 {strides = array<i32>} : memref<2x8x128xf32, #tpu.memory_space<vmem>>, vector<2x8x128xf32>,
    return
  }
}

</mosaic_0001>

<llo_original>
// kernel: decoder_forward.1
$region0: #{decoder_forward.1}
  #allocation0 [shape = 'u32[]', space=smem, size = 0x4, offset = 0x4, fixed_abs, tag = 'smem constant byte address 0x4 - core index']
  #allocation1 [shape = 'u32[144,128]{1,0:T(1,128)}', space=vmem, size = 0x12000, scoped, tag = 'internal scratch']
  %s0 = inlined_call_operand.hbm [shape: f32[16,32], index: 0, kind: input, shape index: {}]
  %s1 = inlined_call_operand.hbm [shape: f32[40,128], index: 1, kind: input, shape index: {}]
  %s2 = inlined_call_operand.hbm [shape: f32[2,8,128], index: 2, kind: output, shape index: {}]
  %s3 = sld [smem:[#allocation0]]
  $region26: #{decoder_forward.1} parent=0
    _
  %s5 = ssub.s32 1, %s3
  %s6 = scalar_select 0, %s5, %s3
  $region1: #{decoder_forward.1} parent=0
    #allocation2 [shape = 'u8[8192]{0}', space=vmem, size = 0x2000, scoped, tag = 'input window, operand 0, single buffered']
    #allocation3 [shape = 's32[1]{0}', space=sflag, size = 0x4, scoped, tag = 'scoped memory for decoder_forward.1']
    #allocation4 [shape = 's32[1]{0}', space=sflag, size = 0x4, scoped, tag = 'scoped memory for decoder_forward.1']
    #allocation5 [shape = 'u8[20480]{0}', space=vmem, size = 0x5000, scoped, tag = 'input window, operand 1, single buffered']
    #allocation6 [shape = 's32[1]{0}', space=sflag, size = 0x4, scoped, tag = 'scoped memory for decoder_forward.1']
    #allocation7 [shape = 'u8[8192]{0}', space=vmem, size = 0x2000, scoped, tag = 'output window, operand 0, single buffered']
    %7 = vsyncpa [#allocation3], 0
    %8 = vsyncpa [#allocation6], 0
    %9 = vsyncpa [#allocation4], 0
    // Predicated region
    $region2: #{decoder_forward.1} parent=1 // pred_check
      _
    $region3: #{decoder_forward.1} parent=1 // pred_check_branch
      %11 = sbr.rel (0) target = $region5
    $region4: #{decoder_forward.1} parent=1 // pred_region
      %s13 = ssub.s32 256, 256
      %14 = vsyncadd [#allocation3], %s13
      %s15 = sshll.u32 [#allocation2], 4
      %s16 = int_to_ptr.vmem [resolvable:$true] %s15
      %21 = dma.hbm_to_vmem [thread:$0]  %s0, 256, %s16, [#allocation3], 128, 128, 8
    $region5: #{decoder_forward.1} parent=1 // pred_fallthru
      _
    // Predicated region
    $region6: #{decoder_forward.1} parent=1 // pred_check
      _
    $region7: #{decoder_forward.1} parent=1 // pred_check_branch
      %23 = sbr.rel (0) target = $region9
    $region8: #{decoder_forward.1} parent=1 // pred_region
      %s25 = ssub.s32 640, 640
      %26 = vsyncadd [#allocation6], %s25
      %s27 = sshll.u32 [#allocation5], 4
      %s28 = int_to_ptr.vmem [resolvable:$true] %s27
      %33 = dma.hbm_to_vmem [thread:$0]  %s1, 640, %s28, [#allocation6], 128, 128, 8
    $region9: #{decoder_forward.1} parent=1 // pred_fallthru
      _
    // Predicated region
    $region10: #{decoder_forward.1} parent=1 // pred_check
      _
    $region11: #{decoder_forward.1} parent=1 // pred_check_branch
      %35 = sbr.rel (0) target = $region13
    $region12: #{decoder_forward.1} parent=1 // pred_region
      %36 = dma.done [#allocation3], 256
    $region13: #{decoder_forward.1} parent=1 // pred_fallthru
      _
    // Predicated region
    $region14: #{decoder_forward.1} parent=1 // pred_check
      _
    $region15: #{decoder_forward.1} parent=1 // pred_check_branch
      %38 = sbr.rel (0) target = $region17
    $region16: #{decoder_forward.1} parent=1 // pred_region
      %39 = dma.done [#allocation6], 640
    $region17: #{decoder_forward.1} parent=1 // pred_fallthru
      _
    %v40 = vld [vmem:[#allocation5] sm:$0xff]
    %v41 = vld [vmem:[#allocation5 + $0x8] sm:$0xff]
    %v42 = vld [vmem:[#allocation5 + $0x10] sm:$0xff]
    %v43 = vld [vmem:[#allocation5 + $0x18] sm:$0xff]
    %v44 = vld [vmem:[#allocation5 + $0x20] sm:$0x1]
    %v45 = vld [vmem:[#allocation2] sm:$0xff]
    %v46 = vld [vmem:[#allocation2 + $0x8] sm:$0xff]
    %v47 = vlaneseq
    %v48 = vshrl.u32 %v47, 7
    %v49 = vsub.s32 0, %v48
    %v50 = vrot.slane %v44, %v49
    %vm51 = vcmask 261120
    %v53 = vsel %vm51, %v45, 0
    %v56 = vsel %vm51, %v46, 0
    %58 = vmatprep.subr.mxu0 0.0
    %59 = vmatpush1.msra.mxu0 0.0
    %60 = vmatprep.subr.mxu0 0.0
    %61 = vmatpush1.msra.mxu0 0.0
    %62 = vmatprep.subr.mxu0 0.0
    %63 = vmatpush1.msra.mxu0 0.0
    %64 = vmatprep.subr.mxu0 0.0
    %65 = vmatpush1.msra.mxu0 0.0
    %66 = vmatprep.subr.mxu0 0.0
    %67 = vmatpush1.msra.mxu0 0.0
    %68 = vmatprep.subr.mxu0 0.0
    %69 = vmatpush1.msra.mxu0 0.0
    %70 = vmatprep.subr.mxu0 0.0
    %71 = vmatpush1.msra.mxu0 0.0
    %72 = vmatprep.subr.mxu0 0.0
    %73 = vmatpush1.msra.mxu0 0.0
    %74 = vmatprep.subr.mxu0 0.0
    %75 = vmatpush1.msra.mxu0 0.0
    %76 = vmatprep.subr.mxu0 0.0
    %77 = vmatpush1.msra.mxu0 0.0
    %78 = vmatprep.subr.mxu0 0.0
    %79 = vmatpush1.msra.mxu0 0.0
    %80 = vmatprep.subr.mxu0 0.0
    %81 = vmatpush1.msra.mxu0 0.0
    %82 = vmatprep.subr.mxu0 0.0
    %83 = vmatpush1.msra.mxu0 %v43
    %84 = vmatprep.subr.mxu0 0.0
    %85 = vmatpush1.msra.mxu0 %v42
    %86 = vmatprep.subr.mxu0 0.0
    %87 = vmatpush1.msra.mxu0 %v41
    %88 = vmatprep.subr.mxu0 0.0
    %89 = vmatpush1.msra.mxu0 %v40
    %90 = vmatprep.subr.mxu0 0.0
    %91 = vmatpush2.msra.mxu0 0.0
    %92 = vmatprep.subr.mxu0 0.0
    %93 = vmatpush2.msra.mxu0 0.0
    %94 = vmatprep.subr.mxu0 0.0
    %95 = vmatpush2.msra.mxu0 0.0
    %96 = vmatprep.subr.mxu0 0.0
    %97 = vmatpush2.msra.mxu0 0.0
    %98 = vmatprep.subr.mxu0 0.0
    %99 = vmatpush2.msra.mxu0 0.0
    %100 = vmatprep.subr.mxu0 0.0
    %101 = vmatpush2.msra.mxu0 0.0
    %102 = vmatprep.subr.mxu0 0.0
    %103 = vmatpush2.msra.mxu0 0.0
    %104 = vmatprep.subr.mxu0 0.0
    %105 = vmatpush2.msra.mxu0 0.0
    %106 = vmatprep.subr.mxu0 0.0
    %107 = vmatpush2.msra.mxu0 0.0
    %108 = vmatprep.subr.mxu0 0.0
    %109 = vmatpush2.msra.mxu0 0.0
    %110 = vmatprep.subr.mxu0 0.0
    %111 = vmatpush2.msra.mxu0 0.0
    %112 = vmatprep.subr.mxu0 0.0
    %113 = vmatpush2.msra.mxu0 0.0
    %114 = vmatprep.subr.mxu0 0.0
    %115 = vmatpush2.msra.mxu0 0.0
    %116 = vmatprep.subr.mxu0 0.0
    %117 = vmatpush2.msra.mxu0 0.0
    %118 = vmatprep.subr.mxu0 0.0
    %119 = vmatpush2.msra.mxu0 0.0
    %120 = vmatprep.subr.mxu0 0.0
    %121 = vmatpush2.msra.mxu0 0.0
    %122 = vmatprep.mubr.f32.mxu0 0.0
    %123 = vmatmul.mubr.f32.gmra.mxu0 %v53
    %v124 = vpop.f32.mrf.mxu0
    %v125 = vadd.f32 %v50, %v124
    %v126 = vpop.f32.mrf.mxu0
    %127 = vmatprep.mubr.f32.mxu0 0.0
    %128 = vmatmul.mubr.f32.gmra.mxu0 %v56
    %v129 = vpop.f32.mrf.mxu0
    %v130 = vadd.f32 %v50, %v129
    %v131 = vpop.f32.mrf.mxu0
    %132 = vdwg.mxu0
    %133 = vst [vmem:[#allocation7] sm:$0xff] %v125
    %134 = vst [vmem:[#allocation7 + $0x8] sm:$0xff] %v130
    // Predicated region
    $region18: #{decoder_forward.1} parent=1 // pred_check
      _
    $region19: #{decoder_forward.1} parent=1 // pred_check_branch
      %136 = sbr.rel (0) target = $region21
    $region20: #{decoder_forward.1} parent=1 // pred_region
      %s138 = ssub.s32 256, 256
      %139 = vsyncadd [#allocation4], %s138
      %s140 = sshll.u32 [#allocation7], 4
      %s141 = int_to_ptr.vmem [resolvable:$true] %s140
      %146 = dma.vmem_to_hbm [thread:$0]  %s141, 256, %s2, [#allocation4], 128, 128, 8
    $region21: #{decoder_forward.1} parent=1 // pred_fallthru
      _
    // Predicated region
    $region22: #{decoder_forward.1} parent=1 // pred_check
      _
    $region23: #{decoder_forward.1} parent=1 // pred_check_branch
      %148 = sbr.rel (0) target = $region25
    $region24: #{decoder_forward.1} parent=1 // pred_region
      %149 = dma.done [#allocation4], 256
    $region25: #{decoder_forward.1} parent=1 // pred_fallthru
      _
    %150 = vsyncpa [#allocation3], 1
    %151 = vsyncpa [#allocation6], 1
    %152 = vsyncpa [#allocation4], 1

</llo_original>
